<compile_context>
chip_gen: v5e
topology: v5e:2x2
jax: 0.10.0
libtpu: 0.0.40
codegen_flags: <defaults>
</compile_context>

<pallas_src>
import functools

import jax
import jax.numpy as jnp
from jax.experimental import pallas as pl
from jax.experimental.pallas import tpu as pltpu

LANE = 128


def mlp_kernel(x_ref,
               w1_ref, t1_ref,
               w2_ref, t2_ref,
               w3_ref, t3_ref,
               w4_ref, b4_ref,
               o_ref):
    cdt = w1_ref.dtype  # MXU operand dtype (f32 or bf16); accumulation is f32

    # Layer 1: Linear (BN scale pre-folded into W) -> +shift -> ReLU
    h = jnp.dot(x_ref[...], w1_ref[...], preferred_element_type=jnp.float32)
    h = jnp.maximum(h + t1_ref[...], 0.0).astype(cdt)
    # TODO(synk): dropout (p=0.3) is identity in eval mode; training-mode masking not implemented.

    # Layer 2
    h = jnp.dot(h, w2_ref[...], preferred_element_type=jnp.float32)
    h = jnp.maximum(h + t2_ref[...], 0.0).astype(cdt)

    # Layer 3
    h = jnp.dot(h, w3_ref[...], preferred_element_type=jnp.float32)
    h = jnp.maximum(h + t3_ref[...], 0.0).astype(cdt)

    # Output layer: plain Linear, columns padded to a lane-dense width.
    o_ref[...] = (jnp.dot(h, w4_ref[...], preferred_element_type=jnp.float32)
                  + b4_ref[...]).astype(o_ref.dtype)


def prepare_params(params, compute_dtype=jnp.float32, eps=1e-5):
    """One-time (model-load) prep: fold BN into (W, shift), pad the output
    layer to 128 lanes, cast MXU operands to `compute_dtype`."""
    (w1, b1, g1, be1, m1, v1,
     w2, b2, g2, be2, m2, v2,
     w3, b3, g3, be3, m3, v3,
     w4, b4) = params

    def fold(w, b, g, be, m, v):
        scale = g * jax.lax.rsqrt(v + eps)
        w_f = (w * scale[None, :]).astype(compute_dtype)
        shift = (be - m * scale + b * scale).reshape(1, -1).astype(jnp.float32)
        return w_f, shift

    w1f, t1 = fold(w1, b1, g1, be1, m1, v1)
    w2f, t2 = fold(w2, b2, g2, be2, m2, v2)
    w3f, t3 = fold(w3, b3, g3, be3, m3, v3)

    num_classes = w4.shape[1]
    nc_pad = max(LANE, pl.cdiv(num_classes, LANE) * LANE)
    w4p = jnp.zeros((w4.shape[0], nc_pad), jnp.float32).at[:, :num_classes].set(w4)
    b4p = jnp.zeros((1, nc_pad), jnp.float32).at[0, :num_classes].set(b4)

    folded = (w1f, t1, w2f, t2, w3f, t3, w4p.astype(compute_dtype), b4p)
    return folded, num_classes


@functools.partial(jax.jit, static_argnames=("num_classes", "tm"))
def simple_nn_forward(x, folded, *, num_classes, tm=256):
    w1, t1, w2, t2, w3, t3, w4, b4 = folded
    B, F = x.shape
    cdt = w1.dtype
    nc_pad = w4.shape[1]

    # Batch tiling: TM rows per grid step (multiple of 8 sublanes); pad the
    # batch up to a multiple of TM. Small batches degenerate to one grid step.
    b8 = max(8, pl.cdiv(B, 8) * 8)
    TM = min(tm, b8)
    B_pad = pl.cdiv(b8, TM) * TM
    if B_pad != B:
        x = jnp.pad(x, ((0, B_pad - B), (0, 0)))
    x = x.astype(cdt)

    grid = (B_pad // TM,)

    def resident(shape):
        # Whole array stays in VMEM; same block every grid step -> DMA'd once.
        return pl.BlockSpec(shape, lambda i: (0, 0))

    in_specs = [
        pl.BlockSpec((TM, F), lambda i: (i, 0)),      # x: tiled over batch
        resident(w1.shape), resident(t1.shape),
        resident(w2.shape), resident(t2.shape),
        resident(w3.shape), resident(t3.shape),
        resident(w4.shape), resident(b4.shape),
    ]
    out_specs = pl.BlockSpec((TM, nc_pad), lambda i: (i, 0))

    itemsize = jnp.dtype(cdt).itemsize
    flops = 2 * B_pad * (w1.shape[0] * w1.shape[1]
                         + w2.shape[0] * w2.shape[1]
                         + w3.shape[0] * w3.shape[1]
                         + w4.shape[0] * w4.shape[1])
    bytes_accessed = (B_pad * F * itemsize + B_pad * nc_pad * 4
                      + sum(a.size * a.dtype.itemsize
                            for a in (w1, t1, w2, t2, w3, t3, w4, b4)))

    out = pl.pallas_call(
        mlp_kernel,
        out_shape=jax.ShapeDtypeStruct((B_pad, nc_pad), jnp.float32),
        grid_spec=pltpu.PrefetchScalarGridSpec(
            num_scalar_prefetch=0,
            grid=grid,
            in_specs=in_specs,
            out_specs=out_specs,
        ),
        compiler_params=pltpu.CompilerParams(
            dimension_semantics=("parallel",),
            vmem_limit_bytes=32 * 1024 * 1024,
        ),
        cost_estimate=pl.CostEstimate(
            flops=int(flops),
            transcendentals=0,
            bytes_accessed=int(bytes_accessed)),
    )(x, w1, t1, w2, t2, w3, t3, w4, b4)

    return out[:B, :num_classes]


def init_params(key, input_size, num_classes):
    dims = [input_size, 256, 128, 64, num_classes]
    keys = jax.random.split(key, 8)
    params = []
    ki = 0
    for li in range(4):
        fan_in, fan_out = dims[li], dims[li + 1]
        bound = 1.0 / jnp.sqrt(fan_in)
        # weight stored as (in, out) == transpose of PyTorch's (out, in)
        w = jax.random.uniform(keys[ki], (fan_in, fan_out), jnp.float32,
                               -bound, bound)
        ki += 1
        b = jax.random.uniform(keys[ki], (fan_out,), jnp.float32, -bound, bound)
        ki += 1
        params.append(w)
        params.append(b)
        if li < 3:
            # BatchNorm1d parameters (PyTorch defaults: gamma=1, beta=0,
            # running_mean=0, running_var=1)
            params.append(jnp.ones((fan_out,), jnp.float32))    # gamma
            params.append(jnp.zeros((fan_out,), jnp.float32))   # beta
            params.append(jnp.zeros((fan_out,), jnp.float32))   # running_mean
            params.append(jnp.ones((fan_out,), jnp.float32))    # running_var
    return tuple(params)


def reference_forward(x, params):
    (w1, b1, g1, be1, m1, v1,
     w2, b2, g2, be2, m2, v2,
     w3, b3, g3, be3, m3, v3,
     w4, b4) = params

    def bn(h, g, be, m, v, eps=1e-5):
        return (h - m) / jnp.sqrt(v + eps) * g + be

    h = jnp.maximum(bn(x @ w1 + b1, g1, be1, m1, v1), 0.0)
    h = jnp.maximum(bn(h @ w2 + b2, g2, be2, m2, v2), 0.0)
    h = jnp.maximum(bn(h @ w3 + b3, g3, be3, m3, v3), 0.0)
    return h @ w4 + b4


if __name__ == "__main__":
    input_size = 32   # stand-in for X_normalized.shape[1]
    num_classes = 6
    batch = 8

    key = jax.random.PRNGKey(0)
    k_x, k_p, k_x2 = jax.random.split(key, 3)
    x = jax.random.normal(k_x, (batch, input_size), jnp.float32)
    params = init_params(k_p, input_size, num_classes)
    ref = reference_forward(x, params)

    # f32 path (default): tight tolerance vs reference.
    folded_f32, nc = prepare_params(params, compute_dtype=jnp.float32)
    out = jax.block_until_ready(simple_nn_forward(x, folded_f32, num_classes=nc))
    assert out.shape == (batch, num_classes)
    assert jnp.allclose(out, ref, atol=1e-4, rtol=1e-4), "f32 mismatch vs reference"

    # Larger batch exercises the batch-tiled grid (grid=(2,)) + row padding.
    x_big = jax.random.normal(k_x2, (300, input_size), jnp.float32)
    out_big = jax.block_until_ready(
        simple_nn_forward(x_big, folded_f32, num_classes=nc))
    ref_big = reference_forward(x_big, params)
    assert out_big.shape == (300, num_classes)
    assert jnp.allclose(out_big, ref_big, atol=1e-4, rtol=1e-4), "tiled mismatch"

    # bf16 operands (v6e/v7x MXU-native), f32 accumulate + f32 epilogue.
    folded_bf16, nc = prepare_params(params, compute_dtype=jnp.bfloat16)
    out_bf16 = jax.block_until_ready(
        simple_nn_forward(x, folded_bf16, num_classes=nc))
    assert out_bf16.shape == (batch, num_classes)
    assert jnp.allclose(out_bf16, ref, atol=1e-1, rtol=1e-1), "bf16 mismatch"

    print("KERNEL_OK")
</pallas_src>

<mosaic_0001>
module attributes {stable_mosaic.version = 11 : i64} {
  func.func @mlp_kernel(%arg0: i32, %arg1: memref<8x32xf32, #tpu.memory_space<vmem>>, %arg2: memref<32x256xf32, #tpu.memory_space<vmem>>, %arg3: memref<1x256xf32, #tpu.memory_space<vmem>>, %arg4: memref<256x128xf32, #tpu.memory_space<vmem>>, %arg5: memref<1x128xf32, #tpu.memory_space<vmem>>, %arg6: memref<128x64xf32, #tpu.memory_space<vmem>>, %arg7: memref<1x64xf32, #tpu.memory_space<vmem>>, %arg8: memref<64x128xf32, #tpu.memory_space<vmem>>, %arg9: memref<1x128xf32, #tpu.memory_space<vmem>>, %arg10: memref<8x128xf32, #tpu.memory_space<vmem>>) attributes {dimension_semantics = [#tpu.dimension_semantics<parallel>], iteration_bounds = array<i64: 1>, scalar_prefetch = 0 : i64, scratch_operands = 0 : i64, tpu.core_type = #tpu.core_type<tc>, window_params = [{transform_indices = @transform_0, window_bounds = array<i64: 8, 32>}, {pipeline_mode = #tpu.pipeline_mode<synchronous>, transform_indices = @transform_1, window_bounds = array<i64: 32, 256>}, {pipeline_mode = #tpu.pipeline_mode<synchronous>, transform_indices = @transform_2, window_bounds = array<i64: 1, 256>}, {pipeline_mode = #tpu.pipeline_mode<synchronous>, transform_indices = @transform_3, window_bounds = array<i64: 256, 128>}, {pipeline_mode = #tpu.pipeline_mode<synchronous>, transform_indices = @transform_4, window_bounds = array<i64: 1, 128>}, {pipeline_mode = #tpu.pipeline_mode<synchronous>, transform_indices = @transform_5, window_bounds = array<i64: 128, 64>}, {pipeline_mode = #tpu.pipeline_mode<synchronous>, transform_indices = @transform_6, window_bounds = array<i64: 1, 64>}, {pipeline_mode = #tpu.pipeline_mode<synchronous>, transform_indices = @transform_7, window_bounds = array<i64: 64, 128>}, {pipeline_mode = #tpu.pipeline_mode<synchronous>, transform_indices = @transform_8, window_bounds = array<i64: 1, 128>}, {transform_indices = @transform_9, window_bounds = array<i64: 8, 128>}]} {
    %c0 = arith.constant 0 : index
    %c0_0 = arith.constant 0 : index
    %0 = vector.load %arg1[%c0, %c0_0] : memref<8x32xf32, #tpu.memory_space<vmem>>, vector<8x32xf32>
    %c0_1 = arith.constant 0 : index
    %c0_2 = arith.constant 0 : index
    %1 = vector.load %arg2[%c0_1, %c0_2] : memref<32x256xf32, #tpu.memory_space<vmem>>, vector<32x256xf32>
    %cst = arith.constant dense<0.000000e+00> : vector<8x256xf32>
    %2 = tpu.matmul %0, %1, %cst {dimension_numbers = #tpu.dot_dimension_numbers<[1], [0], [0], [1], [0, 0, 1, 1], [], []>} : vector<8x32xf32>, vector<32x256xf32>, vector<8x256xf32> -> vector<8x256xf32>
    %c0_3 = arith.constant 0 : index
    %c0_4 = arith.constant 0 : index
    %3 = vector.load %arg3[%c0_3, %c0_4] : memref<1x256xf32, #tpu.memory_space<vmem>>, vector<1x256xf32>
    %4 = vector.broadcast %3 : vector<1x256xf32> to vector<8x256xf32>
    %5 = arith.addf %2, %4 : vector<8x256xf32>
    %cst_5 = arith.constant 0.000000e+00 : f32
    %6 = vector.broadcast %cst_5 : f32 to vector<8x256xf32>
    %7 = arith.maximumf %5, %6 : vector<8x256xf32>
    %c0_6 = arith.constant 0 : index
    %c0_7 = arith.constant 0 : index
    %8 = vector.load %arg4[%c0_6, %c0_7] : memref<256x128xf32, #tpu.memory_space<vmem>>, vector<256x128xf32>
    %cst_8 = arith.constant dense<0.000000e+00> : vector<8x128xf32>
    %9 = tpu.matmul %7, %8, %cst_8 {dimension_numbers = #tpu.dot_dimension_numbers<[1], [0], [0], [1], [0, 0, 1, 1], [], []>} : vector<8x256xf32>, vector<256x128xf32>, vector<8x128xf32> -> vector<8x128xf32>
    %c0_9 = arith.constant 0 : index
    %c0_10 = arith.constant 0 : index
    %10 = vector.load %arg5[%c0_9, %c0_10] : memref<1x128xf32, #tpu.memory_space<vmem>>, vector<1x128xf32>
    %11 = vector.broadcast %10 : vector<1x128xf32> to vector<8x128xf32>
    %12 = arith.addf %9, %11 : vector<8x128xf32>
    %cst_11 = arith.constant 0.000000e+00 : f32
    %13 = vector.broadcast %cst_11 : f32 to vector<8x128xf32>
    %14 = arith.maximumf %12, %13 : vector<8x128xf32>
    %c0_12 = arith.constant 0 : index
    %c0_13 = arith.constant 0 : index
    %15 = vector.load %arg6[%c0_12, %c0_13] : memref<128x64xf32, #tpu.memory_space<vmem>>, vector<128x64xf32>
    %cst_14 = arith.constant dense<0.000000e+00> : vector<8x64xf32>
    %16 = tpu.matmul %14, %15, %cst_14 {dimension_numbers = #tpu.dot_dimension_numbers<[1], [0], [0], [1], [0, 0, 1, 1], [], []>} : vector<8x128xf32>, vector<128x64xf32>, vector<8x64xf32> -> vector<8x64xf32>
    %c0_15 = arith.constant 0 : index
    %c0_16 = arith.constant 0 : index
    %17 = vector.load %arg7[%c0_15, %c0_16] : memref<1x64xf32, #tpu.memory_space<vmem>>, vector<1x64xf32>
    %18 = vector.broadcast %17 : vector<1x64xf32> to vector<8x64xf32>
    %19 = arith.addf %16, %18 : vector<8x64xf32>
    %cst_17 = arith.constant 0.000000e+00 : f32
    %20 = vector.broadcast %cst_17 : f32 to vector<8x64xf32>
    %21 = arith.maximumf %19, %20 : vector<8x64xf32>
    %c0_18 = arith.constant 0 : index
    %c0_19 = arith.constant 0 : index
    %22 = vector.load %arg8[%c0_18, %c0_19] : memref<64x128xf32, #tpu.memory_space<vmem>>, vector<64x128xf32>
    %cst_20 = arith.constant dense<0.000000e+00> : vector<8x128xf32>
    %23 = tpu.matmul %21, %22, %cst_20 {dimension_numbers = #tpu.dot_dimension_numbers<[1], [0], [0], [1], [0, 0, 1, 1], [], []>} : vector<8x64xf32>, vector<64x128xf32>, vector<8x128xf32> -> vector<8x128xf32>
    %c0_21 = arith.constant 0 : index
    %c0_22 = arith.constant 0 : index
    %24 = vector.load %arg9[%c0_21, %c0_22] : memref<1x128xf32, #tpu.memory_space<vmem>>, vector<1x128xf32>
    %25 = vector.broadcast %24 : vector<1x128xf32> to vector<8x128xf32>
    %26 = arith.addf %23, %25 : vector<8x128xf32>
    %c0_23 = arith.constant 0 : index
    %c0_24 = arith.constant 0 : index
    %27 = vector.load %arg10[%c0_23, %c0_24] : memref<8x128xf32, #tpu.memory_space<vmem>>, vector<8x128xf32>
    tpu.vector_store %arg10[%c0_23, %c0_24], %26 {strides = array<i32>} : memref<8x128xf32, #tpu.memory_space<vmem>>, vector<8x128xf32>,
    return
  }
  func.func @transform_0(%arg0: i32) -> (i32, i32) {
    %c0_i32 = arith.constant 0 : i32
    %c0_i32_0 = arith.constant 0 : i32
    return %arg0, %c0_i32 : i32, i32
  }
  func.func @transform_1(%arg0: i32) -> (i32, i32) {
    %c0_i32 = arith.constant 0 : i32
    %c0_i32_0 = arith.constant 0 : i32
    %c0_i32_1 = arith.constant 0 : i32
    return %c0_i32, %c0_i32_0 : i32, i32
  }
  func.func @transform_2(%arg0: i32) -> (i32, i32) {
    %c0_i32 = arith.constant 0 : i32
    %c0_i32_0 = arith.constant 0 : i32
    %c0_i32_1 = arith.constant 0 : i32
    return %c0_i32, %c0_i32_0 : i32, i32
  }
  func.func @transform_3(%arg0: i32) -> (i32, i32) {
    %c0_i32 = arith.constant 0 : i32
    %c0_i32_0 = arith.constant 0 : i32
    %c0_i32_1 = arith.constant 0 : i32
    return %c0_i32, %c0_i32_0 : i32, i32
  }
  func.func @transform_4(%arg0: i32) -> (i32, i32) {
    %c0_i32 = arith.constant 0 : i32
    %c0_i32_0 = arith.constant 0 : i32
    %c0_i32_1 = arith.constant 0 : i32
    return %c0_i32, %c0_i32_0 : i32, i32
  }
  func.func @transform_5(%arg0: i32) -> (i32, i32) {
    %c0_i32 = arith.constant 0 : i32
    %c0_i32_0 = arith.constant 0 : i32
    %c0_i32_1 = arith.constant 0 : i32
    return %c0_i32, %c0_i32_0 : i32, i32
  }
  func.func @transform_6(%arg0: i32) -> (i32, i32) {
    %c0_i32 = arith.constant 0 : i32
    %c0_i32_0 = arith.constant 0 : i32
    %c0_i32_1 = arith.constant 0 : i32
    return %c0_i32, %c0_i32_0 : i32, i32
  }
  func.func @transform_7(%arg0: i32) -> (i32, i32) {
    %c0_i32 = arith.constant 0 : i32
    %c0_i32_0 = arith.constant 0 : i32
    %c0_i32_1 = arith.constant 0 : i32
    return %c0_i32, %c0_i32_0 : i32, i32
  }
  func.func @transform_8(%arg0: i32) -> (i32, i32) {
    %c0_i32 = arith.constant 0 : i32
    %c0_i32_0 = arith.constant 0 : i32
    %c0_i32_1 = arith.constant 0 : i32
    return %c0_i32, %c0_i32_0 : i32, i32
  }
  func.func @transform_9(%arg0: i32) -> (i32, i32) {
    %c0_i32 = arith.constant 0 : i32
    %c0_i32_0 = arith.constant 0 : i32
    return %arg0, %c0_i32 : i32, i32
  }
}

</mosaic_0001>

<llo_original>
// kernel: simple_nn_forward.1
$region0: #{simple_nn_forward.1}
  #allocation0 [shape = 'u32[]', space=smem, size = 0x4, offset = 0x4, fixed_abs, tag = 'smem constant byte address 0x4 - core index']
  #allocation1 [shape = 'u32[72,128]{1,0:T(1,128)}', space=vmem, size = 0x9000, scoped, tag = 'internal scratch']
  %s0 = inlined_call_operand.vmem [shape: f32[8,32], index: 0, kind: input, shape index: {}]
  %s1 = inlined_call_operand.vmem [shape: f32[32,256], index: 1, kind: input, shape index: {}]
  %s2 = inlined_call_operand.vmem [shape: f32[1,256], index: 2, kind: input, shape index: {}]
  %s3 = inlined_call_operand.hbm [shape: f32[256,128], index: 3, kind: input, shape index: {}]
  %s4 = inlined_call_operand.vmem [shape: f32[1,128], index: 4, kind: input, shape index: {}]
  %s5 = inlined_call_operand.vmem [shape: f32[128,64], index: 5, kind: input, shape index: {}]
  %s6 = inlined_call_operand.vmem [shape: f32[1,64], index: 6, kind: input, shape index: {}]
  %s7 = inlined_call_operand.vmem [shape: f32[64,128], index: 7, kind: input, shape index: {}]
  %s8 = inlined_call_operand.vmem [shape: f32[1,128], index: 8, kind: input, shape index: {}]
  %s9 = inlined_call_operand.hbm [shape: f32[8,128], index: 9, kind: output, shape index: {}]
  %s10 = sld [smem:[#allocation0]]
  $region50: #{simple_nn_forward.1} parent=0
    _
  %s12 = ssub.s32 1, %s10
  %s13 = scalar_select 0, %s12, %s10
  $region1: #{simple_nn_forward.1} parent=0
    #allocation2 [shape = 'u8[131072]{0}', space=vmem, size = 0x20000, scoped, tag = 'input window, operand 3, single buffered']
    #allocation3 [shape = 's32[1]{0}', space=sflag, size = 0x4, scoped, tag = 'scoped memory for simple_nn_forward.1']
    #allocation4 [shape = 's32[1]{0}', space=sflag, size = 0x4, scoped, tag = 'scoped memory for simple_nn_forward.1']
    #allocation5 [shape = 'u8[4096]{0}', space=vmem, size = 0x1000, scoped, tag = 'output window, operand 0, single buffered']
    %14 = vsyncpa [#allocation3], 0
    %15 = vsyncpa [#allocation4], 0
    // Predicated region
    $region2: #{simple_nn_forward.1} parent=1 // pred_check
      _
    $region3: #{simple_nn_forward.1} parent=1 // pred_check_branch
      %17 = sbr.rel (0) target = $region5
    $region4: #{simple_nn_forward.1} parent=1 // pred_region
      _
    $region5: #{simple_nn_forward.1} parent=1 // pred_fallthru
      _
    // Predicated region
    $region6: #{simple_nn_forward.1} parent=1 // pred_check
      _
    $region7: #{simple_nn_forward.1} parent=1 // pred_check_branch
      %19 = sbr.rel (0) target = $region9
    $region8: #{simple_nn_forward.1} parent=1 // pred_region
      _
    $region9: #{simple_nn_forward.1} parent=1 // pred_fallthru
      _
    // Predicated region
    $region10: #{simple_nn_forward.1} parent=1 // pred_check
      _
    $region11: #{simple_nn_forward.1} parent=1 // pred_check_branch
      %21 = sbr.rel (0) target = $region13
    $region12: #{simple_nn_forward.1} parent=1 // pred_region
      _
    $region13: #{simple_nn_forward.1} parent=1 // pred_fallthru
      _
    // Predicated region
    $region14: #{simple_nn_forward.1} parent=1 // pred_check
      _
    $region15: #{simple_nn_forward.1} parent=1 // pred_check_branch
      %23 = sbr.rel (0) target = $region17
    $region16: #{simple_nn_forward.1} parent=1 // pred_region
      %25 = vsyncadd [#allocation3], 0
      %s26 = sshll.u32 %s3, 4
      %s27 = int_to_ptr.hbm [resolvable:$true] %s26
      %s28 = sshll.u32 [#allocation2], 4
      %s29 = int_to_ptr.vmem [resolvable:$true] %s28
      %34 = dma.hbm_to_vmem [thread:$0]  %s27, 4096, %s29, [#allocation3], 128, 128, 8
    $region17: #{simple_nn_forward.1} parent=1 // pred_fallthru
      _
    // Predicated region
    $region18: #{simple_nn_forward.1} parent=1 // pred_check
      _
    $region19: #{simple_nn_forward.1} parent=1 // pred_check_branch
      %36 = sbr.rel (0) target = $region21
    $region20: #{simple_nn_forward.1} parent=1 // pred_region
      _
    $region21: #{simple_nn_forward.1} parent=1 // pred_fallthru
      _
    // Predicated region
    $region22: #{simple_nn_forward.1} parent=1 // pred_check
      _
    $region23: #{simple_nn_forward.1} parent=1 // pred_check_branch
      %38 = sbr.rel (0) target = $region25
    $region24: #{simple_nn_forward.1} parent=1 // pred_region
      _
    $region25: #{simple_nn_forward.1} parent=1 // pred_fallthru
      _
    // Predicated region
    $region26: #{simple_nn_forward.1} parent=1 // pred_check
      _
    $region27: #{simple_nn_forward.1} parent=1 // pred_check_branch
      %40 = sbr.rel (0) target = $region29
    $region28: #{simple_nn_forward.1} parent=1 // pred_region
      _
    $region29: #{simple_nn_forward.1} parent=1 // pred_fallthru
      _
    // Predicated region
    $region30: #{simple_nn_forward.1} parent=1 // pred_check
      _
    $region31: #{simple_nn_forward.1} parent=1 // pred_check_branch
      %42 = sbr.rel (0) target = $region33
    $region32: #{simple_nn_forward.1} parent=1 // pred_region
      _
    $region33: #{simple_nn_forward.1} parent=1 // pred_fallthru
      _
    // Predicated region
    $region34: #{simple_nn_forward.1} parent=1 // pred_check
      _
    $region35: #{simple_nn_forward.1} parent=1 // pred_check_branch
      %44 = sbr.rel (0) target = $region37
    $region36: #{simple_nn_forward.1} parent=1 // pred_region
      _
    $region37: #{simple_nn_forward.1} parent=1 // pred_fallthru
      _
    // Predicated region
    $region38: #{simple_nn_forward.1} parent=1 // pred_check
      _
    $region39: #{simple_nn_forward.1} parent=1 // pred_check_branch
      %46 = sbr.rel (0) target = $region41
    $region40: #{simple_nn_forward.1} parent=1 // pred_region
      %48 = dma.done [#allocation3], 4096
    $region41: #{simple_nn_forward.1} parent=1 // pred_fallthru
      _
    %v49 = vld [vmem:[%s0] sm:$0xff]
    %v50 = vld [vmem:[%s1] sm:$0xff]
    %v51 = vld [vmem:[%s1 + $0x8] sm:$0xff]
    %v52 = vld [vmem:[%s1 + $0x10] sm:$0xff]
    %v53 = vld [vmem:[%s1 + $0x18] sm:$0xff]
    %v54 = vld [vmem:[%s1 + $0x20] sm:$0xff]
    %v55 = vld [vmem:[%s1 + $0x28] sm:$0xff]
    %v56 = vld [vmem:[%s1 + $0x30] sm:$0xff]
    %v57 = vld [vmem:[%s1 + $0x38] sm:$0xff]
    %v58 = vld [vmem:[%s2] sm:$0x3]
    %v60 = vperm.slane %v58, 0
    %v61 = vperm.slane %v58, 1
    %vm64 = vcmask 261120
    %v66 = vsel %vm64, %v49, 0
    %68 = vmatpush.msra.mxu0 0.0
    %69 = vmatpush.msra.mxu0 0.0
    %70 = vmatpush.msra.mxu0 0.0
    %71 = vmatpush.msra.mxu0 0.0
    %72 = vmatpush.msra.mxu0 0.0
    %73 = vmatpush.msra.mxu0 0.0
    %74 = vmatpush.msra.mxu0 0.0
    %75 = vmatpush.msra.mxu0 0.0
    %76 = vmatpush.msra.mxu0 0.0
    %77 = vmatpush.msra.mxu0 0.0
    %78 = vmatpush.msra.mxu0 0.0
    %79 = vmatpush.msra.mxu0 0.0
    %80 = vmatpush.msra.mxu0 %v56
    %81 = vmatpush.msra.mxu0 %v54
    %82 = vmatpush.msra.mxu0 %v52
    %83 = vmatpush.msra.mxu0 %v50
    %84 = vmatmul.f32.gmra.mxu0 %v66
    %v85 = vpop.f32.mrf.mxu0
    %v86 = vadd.f32 %v60, %v85
    %87 = vdwg.mxu0
    %88 = vmatpush.msra.mxu0 0.0
    %89 = vmatpush.msra.mxu0 0.0
    %90 = vmatpush.msra.mxu0 0.0
    %91 = vmatpush.msra.mxu0 0.0
    %92 = vmatpush.msra.mxu0 0.0
    %93 = vmatpush.msra.mxu0 0.0
    %94 = vmatpush.msra.mxu0 0.0
    %95 = vmatpush.msra.mxu0 0.0
    %96 = vmatpush.msra.mxu0 0.0
    %97 = vmatpush.msra.mxu0 0.0
    %98 = vmatpush.msra.mxu0 0.0
    %99 = vmatpush.msra.mxu0 0.0
    %100 = vmatpush.msra.mxu0 %v57
    %101 = vmatpush.msra.mxu0 %v55
    %102 = vmatpush.msra.mxu0 %v53
    %103 = vmatpush.msra.mxu0 %v51
    %104 = vmatmul.f32.gmra.mxu0 %v66
    %v105 = vpop.f32.mrf.mxu0
    %v106 = vadd.f32 %v61, %v105
    %107 = vdwg.mxu0
    %v108 = vmax.f32 %v86, 0.0
    %v109 = vmax.f32 %v106, 0.0
    %v110 = vld [vmem:[#allocation2] sm:$0xff]
    %v111 = vld [vmem:[#allocation2 + $0x8] sm:$0xff]
    %v112 = vld [vmem:[#allocation2 + $0x10] sm:$0xff]
    %v113 = vld [vmem:[#allocation2 + $0x18] sm:$0xff]
    %v114 = vld [vmem:[#allocation2 + $0x20] sm:$0xff]
    %v115 = vld [vmem:[#allocation2 + $0x28] sm:$0xff]
    %v116 = vld [vmem:[#allocation2 + $0x30] sm:$0xff]
    %v117 = vld [vmem:[#allocation2 + $0x38] sm:$0xff]
    %v118 = vld [vmem:[#allocation2 + $0x40] sm:$0xff]
    %v119 = vld [vmem:[#allocation2 + $0x48] sm:$0xff]
    %v120 = vld [vmem:[#allocation2 + $0x50] sm:$0xff]
    %v121 = vld [vmem:[#allocation2 + $0x58] sm:$0xff]
    %v122 = vld [vmem:[#allocation2 + $0x60] sm:$0xff]
    %v123 = vld [vmem:[#allocation2 + $0x68] sm:$0xff]
    %v124 = vld [vmem:[#allocation2 + $0x70] sm:$0xff]
    %v125 = vld [vmem:[#allocation2 + $0x78] sm:$0xff]
    %v126 = vld [vmem:[#allocation2 + $0x80] sm:$0xff]
    %v127 = vld [vmem:[#allocation2 + $0x88] sm:$0xff]
    %v128 = vld [vmem:[#allocation2 + $0x90] sm:$0xff]
    %v129 = vld [vmem:[#allocation2 + $0x98] sm:$0xff]
    %v130 = vld [vmem:[#allocation2 + $0xa0] sm:$0xff]
    %v131 = vld [vmem:[#allocation2 + $0xa8] sm:$0xff]
    %v132 = vld [vmem:[#allocation2 + $0xb0] sm:$0xff]
    %v133 = vld [vmem:[#allocation2 + $0xb8] sm:$0xff]
    %v134 = vld [vmem:[#allocation2 + $0xc0] sm:$0xff]
    %v135 = vld [vmem:[#allocation2 + $0xc8] sm:$0xff]
    %v136 = vld [vmem:[#allocation2 + $0xd0] sm:$0xff]
    %v137 = vld [vmem:[#allocation2 + $0xd8] sm:$0xff]
    %v138 = vld [vmem:[#allocation2 + $0xe0] sm:$0xff]
    %v139 = vld [vmem:[#allocation2 + $0xe8] sm:$0xff]
    %v140 = vld [vmem:[#allocation2 + $0xf0] sm:$0xff]
    %v141 = vld [vmem:[#allocation2 + $0xf8] sm:$0xff]
    %v142 = vld [vmem:[%s4] sm:$0x1]
    %v144 = vperm.slane %v142, 0
    %146 = vmatpush.msra.mxu0 %v125
    %147 = vmatpush.msra.mxu0 %v124
    %148 = vmatpush.msra.mxu0 %v123
    %149 = vmatpush.msra.mxu0 %v122
    %150 = vmatpush.msra.mxu0 %v121
    %151 = vmatpush.msra.mxu0 %v120
    %152 = vmatpush.msra.mxu0 %v119
    %153 = vmatpush.msra.mxu0 %v118
    %154 = vmatpush.msra.mxu0 %v117
    %155 = vmatpush.msra.mxu0 %v116
    %156 = vmatpush.msra.mxu0 %v115
    %157 = vmatpush.msra.mxu0 %v114
    %158 = vmatpush.msra.mxu0 %v113
    %159 = vmatpush.msra.mxu0 %v112
    %160 = vmatpush.msra.mxu0 %v111
    %161 = vmatpush.msra.mxu0 %v110
    %162 = vmatmul.f32.gmra.mxu0 %v108
    %v163 = vpop.f32.mrf.mxu0
    %v164 = vadd.f32 %v144, %v163
    %165 = vdwg.mxu0
    %166 = vmatpush.msra.mxu0 %v141
    %167 = vmatpush.msra.mxu0 %v140
    %168 = vmatpush.msra.mxu0 %v139
    %169 = vmatpush.msra.mxu0 %v138
    %170 = vmatpush.msra.mxu0 %v137
    %171 = vmatpush.msra.mxu0 %v136
    %172 = vmatpush.msra.mxu0 %v135
    %173 = vmatpush.msra.mxu0 %v134
    %174 = vmatpush.msra.mxu0 %v133
    %175 = vmatpush.msra.mxu0 %v132
    %176 = vmatpush.msra.mxu0 %v131
    %177 = vmatpush.msra.mxu0 %v130
    %178 = vmatpush.msra.mxu0 %v129
    %179 = vmatpush.msra.mxu0 %v128
    %180 = vmatpush.msra.mxu0 %v127
    %181 = vmatpush.msra.mxu0 %v126
    %182 = vmatmul.f32.gmra.mxu0 %v109
    %v183 = vpop.f32.mrf.mxu0
    %v184 = vadd.f32 %v164, %v183
    %185 = vdwg.mxu0
    %v186 = vmax.f32 %v184, 0.0
    %v187 = vld [vmem:[%s5] sm:$0xff]
    %v188 = vld [vmem:[%s5 + $0x8] sm:$0xff]
    %v189 = vld [vmem:[%s5 + $0x10] sm:$0xff]
    %v190 = vld [vmem:[%s5 + $0x18] sm:$0xff]
    %v191 = vld [vmem:[%s5 + $0x20] sm:$0xff]
    %v192 = vld [vmem:[%s5 + $0x28] sm:$0xff]
    %v193 = vld [vmem:[%s5 + $0x30] sm:$0xff]
    %v194 = vld [vmem:[%s5 + $0x38] sm:$0xff]
    %v195 = vld [vmem:[%s5 + $0x40] sm:$0xff]
    %v196 = vld [vmem:[%s5 + $0x48] sm:$0xff]
    %v197 = vld [vmem:[%s5 + $0x50] sm:$0xff]
    %v198 = vld [vmem:[%s5 + $0x58] sm:$0xff]
    %v199 = vld [vmem:[%s5 + $0x60] sm:$0xff]
    %v200 = vld [vmem:[%s5 + $0x68] sm:$0xff]
    %v201 = vld [vmem:[%s5 + $0x70] sm:$0xff]
    %v202 = vld [vmem:[%s5 + $0x78] sm:$0xff]
    %v203 = vld [vmem:[%s6] sm:$0x1]
    %v205 = vperm.slane %v203, 0
    %207 = vmatpush.msra.mxu0 %v202
    %208 = vmatpush.msra.mxu0 %v201
    %209 = vmatpush.msra.mxu0 %v200
    %210 = vmatpush.msra.mxu0 %v199
    %211 = vmatpush.msra.mxu0 %v198
    %212 = vmatpush.msra.mxu0 %v197
    %213 = vmatpush.msra.mxu0 %v196
    %214 = vmatpush.msra.mxu0 %v195
    %215 = vmatpush.msra.mxu0 %v194
    %216 = vmatpush.msra.mxu0 %v193
    %217 = vmatpush.msra.mxu0 %v192
    %218 = vmatpush.msra.mxu0 %v191
    %219 = vmatpush.msra.mxu0 %v190
    %220 = vmatpush.msra.mxu0 %v189
    %221 = vmatpush.msra.mxu0 %v188
    %222 = vmatpush.msra.mxu0 %v187
    %223 = vmatmul.f32.gmra.mxu0 %v186
    %v224 = vpop.f32.mrf.mxu0
    %v225 = vadd.f32 %v205, %v224
    %226 = vdwg.mxu0
    %v227 = vmax.f32 %v225, 0.0
    %v228 = vld [vmem:[%s7] sm:$0xff]
    %v229 = vld [vmem:[%s7 + $0x8] sm:$0xff]
    %v230 = vld [vmem:[%s7 + $0x10] sm:$0xff]
    %v231 = vld [vmem:[%s7 + $0x18] sm:$0xff]
    %v232 = vld [vmem:[%s7 + $0x20] sm:$0xff]
    %v233 = vld [vmem:[%s7 + $0x28] sm:$0xff]
    %v234 = vld [vmem:[%s7 + $0x30] sm:$0xff]
    %v235 = vld [vmem:[%s7 + $0x38] sm:$0xff]
    %v236 = vld [vmem:[%s8] sm:$0x1]
    %v238 = vperm.slane %v236, 0
    %vm240 = vcmask 523264
    %v242 = vsel %vm240, %v227, 0
    %244 = vmatpush.msra.mxu0 0.0
    %245 = vmatpush.msra.mxu0 0.0
    %246 = vmatpush.msra.mxu0 0.0
    %247 = vmatpush.msra.mxu0 0.0
    %248 = vmatpush.msra.mxu0 0.0
    %249 = vmatpush.msra.mxu0 0.0
    %250 = vmatpush.msra.mxu0 0.0
    %251 = vmatpush.msra.mxu0 0.0
    %252 = vmatpush.msra.mxu0 %v235
    %253 = vmatpush.msra.mxu0 %v234
    %254 = vmatpush.msra.mxu0 %v233
    %255 = vmatpush.msra.mxu0 %v232
    %256 = vmatpush.msra.mxu0 %v231
    %257 = vmatpush.msra.mxu0 %v230
    %258 = vmatpush.msra.mxu0 %v229
    %259 = vmatpush.msra.mxu0 %v228
    %260 = vmatmul.f32.gmra.mxu0 %v242
    %v261 = vpop.f32.mrf.mxu0
    %v262 = vadd.f32 %v238, %v261
    %263 = vdwg.mxu0
    %264 = vst [vmem:[#allocation5] sm:$0xff] %v262
    // Predicated region
    $region42: #{simple_nn_forward.1} parent=1 // pred_check
      _
    $region43: #{simple_nn_forward.1} parent=1 // pred_check_branch
      %266 = sbr.rel (0) target = $region45
    $region44: #{simple_nn_forward.1} parent=1 // pred_region
      %268 = vsyncadd [#allocation4], 0
      %s270 = sshll.u32 [#allocation5], 4
      %s271 = int_to_ptr.vmem [resolvable:$true] %s270
      %s272 = sshll.u32 %s9, 4
      %s273 = int_to_ptr.hbm [resolvable:$true] %s272
      %275 = dma.vmem_to_hbm [thread:$0]  %s271, 128, %s273, [#allocation4]
    $region45: #{simple_nn_forward.1} parent=1 // pred_fallthru
      _
    // Predicated region
    $region46: #{simple_nn_forward.1} parent=1 // pred_check
      _
    $region47: #{simple_nn_forward.1} parent=1 // pred_check_branch
      %277 = sbr.rel (0) target = $region49
    $region48: #{simple_nn_forward.1} parent=1 // pred_region
      %279 = dma.done [#allocation4], 128
    $region49: #{simple_nn_forward.1} parent=1 // pred_fallthru
      _
    %280 = vsyncpa [#allocation3], 1
    %281 = vsyncpa [#allocation4], 1

</llo_original>
